<compile_context>
chip_gen: v7x
topology: tpu7x:2x2x1
jax: 0.10.0
libtpu: 0.0.40
codegen_flags: <defaults>
</compile_context>

<pallas_src>
import math

import jax
import jax.numpy as jnp
from jax import lax
from jax.experimental import pallas as pl
from jax.experimental.pallas import tpu as pltpu


def _make_cce_kernel(tb, b_total, needs_mask):
    """Build the per-block kernel.

    out_ref / tgt_ref : VMEM tiles (tb, C) in their native dtype.
    partial_ref       : VMEM tile (1, 8, 128) f32 -- every element holds this
                        block's  sum(target * (logsumexp - shifted)).
    """

    def kernel(out_ref, tgt_ref, partial_ref):
        x = out_ref[...]                               # native dtype (tb, C)
        t = tgt_ref[...]                               # native dtype (tb, C)

        if needs_mask:
            # Ragged last block: rows >= b_total contain unspecified data.
            # Mask BOTH operands (exp(garbage) could be Inf and 0*Inf = NaN).
            base = pl.program_id(0) * tb
            row_id = base + lax.broadcasted_iota(jnp.int32, (tb, 1), 0)
            valid = row_id < b_total                   # (tb, 1)
            x = jnp.where(valid, x, 0)
            t = jnp.where(valid, t, 0)

        # Row max on the native dtype (bf16 max is exact); upcast happens
        # inside the fused subtract rather than as a full-tile f32 copy.
        m = jnp.max(x, axis=-1, keepdims=True)                     # (tb, 1)
        shifted = x.astype(jnp.float32) - m.astype(jnp.float32)    # (tb, C) f32

        s_r = jnp.sum(jnp.exp(shifted), axis=-1, keepdims=True)    # (tb, 1)
        t_r = jnp.sum(t.astype(jnp.float32), axis=-1, keepdims=True)
        d_r = jnp.sum(t * shifted, axis=-1, keepdims=True)         # promotes to f32

        # sum_c t*(lse - shifted) == log(S_r)*T_r - D_r   (per row)
        block_sum = jnp.sum(jnp.log(s_r) * t_r - d_r)
        partial_ref[...] = jnp.full(partial_ref.shape, block_sum, jnp.float32)

    return kernel


def categorical_cross_entropy(output, target, *, max_rows_per_block=None,
                              target_step_input_bytes=8 * 1024 * 1024):
    """output, target: (B, C) arrays (f32 or bf16). Returns scalar f32 loss."""
    B, C = output.shape
    assert target.shape == (B, C)

    # --- generation-aware VMEM budgeting --------------------------------
    try:
        vmem_phys = int(pltpu.get_tpu_info().vmem_capacity_bytes)
    except Exception:
        vmem_phys = 64 * 1024 * 1024     # conservative (v7x per-core VMEM)
    vmem_limit = (vmem_phys * 3) // 4    # ~96 MiB on v5e/v6e, ~48 MiB on v7x
    vmem_budget = vmem_phys // 3

    out_isz = jnp.dtype(output.dtype).itemsize
    tgt_isz = jnp.dtype(target.dtype).itemsize
    in_bytes_per_row = C * (out_isz + tgt_isz)

    # Per-row VMEM footprint: double-buffered pipelined inputs plus ~3 live
    # f32 (row, C) intermediates (shifted, exp(shifted), t*shifted).
    vmem_row_cost = 2 * in_bytes_per_row + 3 * C * 4
    tb_cap = max(16, (vmem_budget // vmem_row_cost) // 16 * 16)

    # Rows needed to stream >= target bytes of input per grid step (amortizes
    # the ~0.35us fixed per-step cost); multiple of 16 satisfies both f32
    # (8,128) and bf16 (16,128) sublane tilings.
    tb_target = -(-target_step_input_bytes // in_bytes_per_row)
    tb_target = ((tb_target + 15) // 16) * 16

    tb = min(tb_cap, tb_target)
    if max_rows_per_block is not None:
        tb = min(tb, max(16, (max_rows_per_block // 16) * 16))
    if B <= tb:
        tb = B                      # single block: block == full array, any B ok
    num_blocks = pl.cdiv(B, tb)
    needs_mask = (num_blocks * tb) != B

    kernel = _make_cce_kernel(tb, B, needs_mask)

    partials = pl.pallas_call(
        kernel,
        out_shape=jax.ShapeDtypeStruct((num_blocks, 8, 128), jnp.float32),
        grid=(num_blocks,),
        in_specs=[
            pl.BlockSpec((tb, C), lambda i: (i, 0)),
            pl.BlockSpec((tb, C), lambda i: (i, 0)),
        ],
        # Disjoint per-block output tile -> safe under "parallel" (v7x 2 TCs).
        out_specs=pl.BlockSpec((1, 8, 128), lambda i: (i, 0, 0)),
        compiler_params=pltpu.CompilerParams(
            dimension_semantics=("parallel",),
            vmem_limit_bytes=int(vmem_limit),
        ),
    )(output, target)

    # Fold the negate, 1/ln(10) and 1/B into a single final scalar multiply.
    total = jnp.sum(partials[:, 0, 0])
    return total * jnp.float32(1.0 / (math.log(10.0) * B))


def _reference(output, target):
    x = output.astype(jnp.float32)
    t = target.astype(jnp.float32)
    logits = jax.nn.softmax(x, axis=1)
    loss = jnp.sum(-t * (jnp.log(logits) / jnp.log(10.0)))
    return loss / output.shape[0]


if __name__ == "__main__":
    key = jax.random.PRNGKey(0)
    k1, k2, k3, k4 = jax.random.split(key, 4)

    # Case 1: small f32 problem, single block (block == full array).
    B, C = 16, 128
    out1 = jax.random.normal(k1, (B, C), dtype=jnp.float32)
    tgt1 = jax.nn.softmax(jax.random.normal(k2, (B, C), dtype=jnp.float32), axis=1)
    loss1 = jax.block_until_ready(jax.jit(categorical_cross_entropy)(out1, tgt1))
    ref1 = _reference(out1, tgt1)
    assert jnp.allclose(loss1, ref1, rtol=1e-5, atol=1e-5), (loss1, ref1)

    # Case 2: bf16 inputs, multi-block grid with a ragged (masked) last block.
    B2, C2 = 200, 256
    out2 = jax.random.normal(k3, (B2, C2), dtype=jnp.float32).astype(jnp.bfloat16)
    tgt2 = jax.nn.softmax(
        jax.random.normal(k4, (B2, C2), dtype=jnp.float32), axis=1
    ).astype(jnp.bfloat16)
    fn2 = jax.jit(lambda o, t: categorical_cross_entropy(o, t, max_rows_per_block=64))
    loss2 = jax.block_until_ready(fn2(out2, tgt2))
    ref2 = _reference(out2, tgt2)
    assert jnp.allclose(loss2, ref2, rtol=2e-4, atol=2e-4), (loss2, ref2)

    print("KERNEL_OK")
</pallas_src>

<mosaic_0001>
module attributes {stable_mosaic.version = 11 : i64} {
  func.func @kernel(%arg0: i32, %arg1: memref<16x128xf32, #tpu.memory_space<vmem>>, %arg2: memref<16x128xf32, #tpu.memory_space<vmem>>, %arg3: memref<1x8x128xf32, #tpu.memory_space<vmem>>) attributes {dimension_semantics = [#tpu.dimension_semantics<parallel>], iteration_bounds = array<i64: 1>, scalar_prefetch = 0 : i64, scratch_operands = 0 : i64, tpu.core_type = #tpu.core_type<tc>, window_params = [{transform_indices = @transform_0, window_bounds = array<i64: 16, 128>}, {transform_indices = @transform_1, window_bounds = array<i64: 16, 128>}, {transform_indices = @transform_2, window_bounds = array<i64: 1, 8, 128>}]} {
    %c0 = arith.constant 0 : index
    %c0_0 = arith.constant 0 : index
    %0 = vector.load %arg1[%c0, %c0_0] : memref<16x128xf32, #tpu.memory_space<vmem>>, vector<16x128xf32>
    %c0_1 = arith.constant 0 : index
    %c0_2 = arith.constant 0 : index
    %1 = vector.load %arg2[%c0_1, %c0_2] : memref<16x128xf32, #tpu.memory_space<vmem>>, vector<16x128xf32>
    %cst = arith.constant dense<0xFF800000> : vector<16xf32>
    %2 = vector.multi_reduction <maximumf>, %0, %cst [1] : vector<16x128xf32> to vector<16xf32>
    %3 = vector.shape_cast %2 : vector<16xf32> to vector<16x1xf32>
    %4 = vector.broadcast %3 : vector<16x1xf32> to vector<16x128xf32>
    %5 = arith.subf %0, %4 : vector<16x128xf32>
    %6 = math.exp %5 : vector<16x128xf32>
    %cst_3 = arith.constant dense<0.000000e+00> : vector<16xf32>
    %7 = vector.multi_reduction <add>, %6, %cst_3 [1] : vector<16x128xf32> to vector<16xf32>
    %8 = vector.shape_cast %7 : vector<16xf32> to vector<16x1xf32>
    %cst_4 = arith.constant dense<0.000000e+00> : vector<16xf32>
    %9 = vector.multi_reduction <add>, %1, %cst_4 [1] : vector<16x128xf32> to vector<16xf32>
    %10 = vector.shape_cast %9 : vector<16xf32> to vector<16x1xf32>
    %11 = arith.mulf %1, %5 : vector<16x128xf32>
    %cst_5 = arith.constant dense<0.000000e+00> : vector<16xf32>
    %12 = vector.multi_reduction <add>, %11, %cst_5 [1] : vector<16x128xf32> to vector<16xf32>
    %13 = vector.shape_cast %12 : vector<16xf32> to vector<16x1xf32>
    %14 = math.log %8 : vector<16x1xf32>
    %15 = arith.mulf %14, %10 : vector<16x1xf32>
    %16 = arith.subf %15, %13 : vector<16x1xf32>
    %17 = vector.shape_cast %16 : vector<16x1xf32> to vector<1x16x1xf32>
    %cst_6 = arith.constant dense<0.000000e+00> : vector<1xf32>
    %18 = vector.multi_reduction <add>, %17, %cst_6 [1, 2] : vector<1x16x1xf32> to vector<1xf32>
    %19 = vector.shape_cast %18 : vector<1xf32> to vector<1x1x1xf32>
    %20 = vector.extract %19[0, 0, 0] : f32 from vector<1x1x1xf32>
    %21 = vector.broadcast %20 : f32 to vector<1x8x128xf32>
    %c0_7 = arith.constant 0 : index
    %c0_8 = arith.constant 0 : index
    %c0_9 = arith.constant 0 : index
    %22 = vector.load %arg3[%c0_7, %c0_8, %c0_9] : memref<1x8x128xf32, #tpu.memory_space<vmem>>, vector<1x8x128xf32>
    tpu.vector_store %arg3[%c0_7, %c0_8, %c0_9], %21 {strides = array<i32>} : memref<1x8x128xf32, #tpu.memory_space<vmem>>, vector<1x8x128xf32>,
    return
  }
  func.func @transform_0(%arg0: i32) -> (i32, i32) {
    %c0_i32 = arith.constant 0 : i32
    %c0_i32_0 = arith.constant 0 : i32
    return %arg0, %c0_i32 : i32, i32
  }
  func.func @transform_1(%arg0: i32) -> (i32, i32) {
    %c0_i32 = arith.constant 0 : i32
    %c0_i32_0 = arith.constant 0 : i32
    return %arg0, %c0_i32 : i32, i32
  }
  func.func @transform_2(%arg0: i32) -> (i32, i32, i32) {
    %c0_i32 = arith.constant 0 : i32
    %c0_i32_0 = arith.constant 0 : i32
    %c0_i32_1 = arith.constant 0 : i32
    return %arg0, %c0_i32, %c0_i32_0 : i32, i32, i32
  }
}

</mosaic_0001>

<llo_original>
// kernel: categorical_cross_entropy.1
$region0: #{categorical_cross_entropy.1}
  #allocation0 [shape = 'u32[]', space=smem, size = 0x4, offset = 0x4, fixed_abs, tag = 'smem constant byte address 0x4 - core index']
  #allocation1 [shape = 'u32[144,128]{1,0:T(1,128)}', space=vmem, size = 0x12000, scoped, tag = 'internal scratch']
  %s0 = inlined_call_operand.hbm [shape: f32[16,128], index: 0, kind: input, shape index: {}]
  %s1 = inlined_call_operand.hbm [shape: f32[16,128], index: 1, kind: input, shape index: {}]
  %s2 = inlined_call_operand.vmem [shape: f32[1,8,128], index: 2, kind: output, shape index: {}]
  %s3 = sld [smem:[#allocation0]]
  $region26: #{categorical_cross_entropy.1} parent=0
    _
  %s5 = ssub.s32 1, %s3
  %s6 = scalar_select 0, %s5, %s3
  $region1: #{categorical_cross_entropy.1} parent=0
    #allocation2 [shape = 'u8[8192]{0}', space=vmem, size = 0x2000, scoped, tag = 'input window, operand 0, single buffered']
    #allocation3 [shape = 's32[1]{0}', space=sflag, size = 0x4, scoped, tag = 'scoped memory for categorical_cross_entropy.1']
    #allocation4 [shape = 'u8[8192]{0}', space=vmem, size = 0x2000, scoped, tag = 'input window, operand 1, single buffered']
    #allocation5 [shape = 's32[1]{0}', space=sflag, size = 0x4, scoped, tag = 'scoped memory for categorical_cross_entropy.1']
    %7 = vsyncpa [#allocation3], 0
    %8 = vsyncpa [#allocation5], 0
    // Predicated region
    $region2: #{categorical_cross_entropy.1} parent=1 // pred_check
      _
    $region3: #{categorical_cross_entropy.1} parent=1 // pred_check_branch
      %10 = sbr.rel (0) target = $region5
    $region4: #{categorical_cross_entropy.1} parent=1 // pred_region
      %s12 = ssub.s32 256, 256
      %13 = vsyncadd [#allocation3], %s12
      %s14 = sshll.u32 [#allocation2], 4
      %s15 = int_to_ptr.vmem [resolvable:$true] %s14
      %20 = dma.hbm_to_vmem [thread:$0]  %s0, 256, %s15, [#allocation3], 128, 128, 8
    $region5: #{categorical_cross_entropy.1} parent=1 // pred_fallthru
      _
    // Predicated region
    $region6: #{categorical_cross_entropy.1} parent=1 // pred_check
      _
    $region7: #{categorical_cross_entropy.1} parent=1 // pred_check_branch
      %22 = sbr.rel (0) target = $region9
    $region8: #{categorical_cross_entropy.1} parent=1 // pred_region
      %s24 = ssub.s32 256, 256
      %25 = vsyncadd [#allocation5], %s24
      %s26 = sshll.u32 [#allocation4], 4
      %s27 = int_to_ptr.vmem [resolvable:$true] %s26
      %32 = dma.hbm_to_vmem [thread:$0]  %s1, 256, %s27, [#allocation5], 128, 128, 8
    $region9: #{categorical_cross_entropy.1} parent=1 // pred_fallthru
      _
    // Predicated region
    $region10: #{categorical_cross_entropy.1} parent=1 // pred_check
      _
    $region11: #{categorical_cross_entropy.1} parent=1 // pred_check_branch
      %34 = sbr.rel (0) target = $region13
    $region12: #{categorical_cross_entropy.1} parent=1 // pred_region
      %35 = dma.done [#allocation3], 256
    $region13: #{categorical_cross_entropy.1} parent=1 // pred_fallthru
      _
    // Predicated region
    $region14: #{categorical_cross_entropy.1} parent=1 // pred_check
      _
    $region15: #{categorical_cross_entropy.1} parent=1 // pred_check_branch
      %37 = sbr.rel (0) target = $region17
    $region16: #{categorical_cross_entropy.1} parent=1 // pred_region
      %38 = dma.done [#allocation5], 256
    $region17: #{categorical_cross_entropy.1} parent=1 // pred_fallthru
      _
    %v39 = vld [vmem:[#allocation2] sm:$0xff]
    %v40 = vld [vmem:[#allocation2 + $0x8] sm:$0xff]
    %v41 = vld [vmem:[#allocation4] sm:$0xff]
    %v42 = vld [vmem:[#allocation4 + $0x8] sm:$0xff]
    %43 = vmax.xlane.f32.xlu0 %v39
    %v44 = vpop.xlane.xlu0 %43
    %45 = vmax.xlane.f32.xlu0 %v40
    %v46 = vpop.xlane.xlu0 %45
    %v47 = vsub.f32 %v39, %v44
    %v48 = vsub.f32 %v40, %v46
    %v49 = vmul.f32 %v47, 1.442695
    %v50 = vpow.pop %v49
    %v51 = vmul.f32 %v48, 1.442695
    %v52 = vpow.pop %v51
    %53 = vadd.xlane.f32.xlu0 %v50
    %v54 = vpop.xlane.xlu0 %53
    %55 = vadd.xlane.f32.xlu0 %v52
    %v56 = vpop.xlane.xlu0 %55
    %57 = vadd.xlane.f32.xlu0 %v41
    %v58 = vpop.xlane.xlu0 %57
    %59 = vadd.xlane.f32.xlu0 %v42
    %v60 = vpop.xlane.xlu0 %59
    %v61 = vmul.f32 %v41, %v47
    %v62 = vmul.f32 %v42, %v48
    %63 = vadd.xlane.f32.xlu0 %v61
    %v64 = vpop.xlane.xlu0 %63
    %65 = vadd.xlane.f32.xlu0 %v62
    %v66 = vpop.xlane.xlu0 %65
    %v67 = vlog2.pop %v54
    %v68 = vmul.f32 %v67, 0.6931472
    %v69 = vlog2.pop %v56
    %v70 = vmul.f32 %v69, 0.6931472
    %v71 = vmul.f32 %v68, %v58
    %v72 = vmul.f32 %v70, %v60
    %v73 = vsub.f32 %v71, %v64
    %v74 = vsub.f32 %v72, %v66
    %vm75 = vcmask 7168
    %v76 = vsel %vm75, %v73, 0.0
    %v77 = vsel %vm75, %v74, 0.0
    %v78 = vadd.f32 %v76, %v77
    %79 = vadd.xlane.f32.xlu0 %v78
    %v80 = vpop.xlane.xlu0 %79
    %v81 = vrot.slane %v80, 4
    %v82 = vadd.f32 %v80, %v81
    %v83 = vrot.slane %v82, 2
    %v84 = vadd.f32 %v82, %v83
    %v85 = vrot.slane %v84, 1
    %v86 = vadd.f32 %v84, %v85
    %s87 = vtos %v86
    %v88 = vstv %s87
    %89 = vst [vmem:[%s2] sm:$0xff] %v88
    // Predicated region
    $region18: #{categorical_cross_entropy.1} parent=1 // pred_check
      _
    $region19: #{categorical_cross_entropy.1} parent=1 // pred_check_branch
      %91 = sbr.rel (0) target = $region21
    $region20: #{categorical_cross_entropy.1} parent=1 // pred_region
      _
    $region21: #{categorical_cross_entropy.1} parent=1 // pred_fallthru
      _
    // Predicated region
    $region22: #{categorical_cross_entropy.1} parent=1 // pred_check
      _
    $region23: #{categorical_cross_entropy.1} parent=1 // pred_check_branch
      %93 = sbr.rel (0) target = $region25
    $region24: #{categorical_cross_entropy.1} parent=1 // pred_region
      _
    $region25: #{categorical_cross_entropy.1} parent=1 // pred_fallthru
      _
    %94 = vsyncpa [#allocation3], 1
    %95 = vsyncpa [#allocation5], 1

</llo_original>
